<compile_context>
chip_gen: v5e
topology: v5e:2x2
jax: 0.10.0
libtpu: 0.0.40
codegen_flags: <defaults>
</compile_context>

<pallas_src>
import jax
import jax.numpy as jnp
from jax.experimental import pallas as pl
from jax.experimental.pallas import tpu as pltpu

EPS = 1e-5


def _round_up(x, m):
    return (x + m - 1) // m * m


def _cdiv(a, b):
    return -(-a // b)


def prenorm_kernel(x_ref, g_ref, b_ref, w_ref, wb_ref, o_ref):
    # x_ref / o_ref : (1, C, rt, 128) VMEM blocks.  Each channel is a fully
    # packed (rt, 128) slab -> every vector op below is full-occupancy VPU work
    # and every store is a full-tile vst.
    # g_ref, b_ref, wb_ref : (C,) f32 in SMEM; w_ref : (C_out, C_in) f32 SMEM.
    C = x_ref.shape[1]

    xs = [x_ref[0, ci].astype(jnp.float32) for ci in range(C)]   # C slabs

    # Channel statistics (unbiased=False).  Channels sit on a non-minor axis,
    # so the reduction is plain elementwise adds across slabs -- no XLU reduce.
    mean = xs[0]
    for ci in range(1, C):
        mean = mean + xs[ci]
    mean = mean * (1.0 / C)

    xc = [v - mean for v in xs]

    var = xc[0] * xc[0]
    for ci in range(1, C):
        var = var + xc[ci] * xc[ci]
    var = var * (1.0 / C)

    inv = jax.lax.rsqrt(var + EPS)

    # LayerNorm affine: per-channel SMEM scalars broadcast over full slabs.
    y = [xc[ci] * inv * g_ref[ci] + b_ref[ci] for ci in range(C)]

    # fn = 1x1 conv: C_out * C_in full-slab scalar-broadcast FMAs on the VPU.
    # Each output channel is written directly to its slot (no concatenate,
    # no relayout copy, no intermediate VMEM staging).
    # TODO(synk): MXU path for C >= 128 (C on lanes, bf16 matmul, f32 acc).
    for co in range(C):
        acc = y[0] * w_ref[co, 0]
        for ci in range(1, C):
            acc = acc + y[ci] * w_ref[co, ci]
        o_ref[0, co] = (acc + wb_ref[co]).astype(o_ref.dtype)


def prenorm_pointwise(x_nchw, g, b, w, wb, *, max_block_bytes=2 << 20):
    """x_nchw: (N, C, H, W).  g, b, wb: (C,).  w: (C_out, C_in)."""
    N, C, H, W = x_nchw.shape
    assert C <= 16, "small-C VPU path only; see TODO for an MXU path"
    S = H * W
    dtype = x_nchw.dtype
    itemsize = jnp.dtype(dtype).itemsize

    # Free reshape (NCHW contiguous) into (N, C, S//128, 128): spatial goes on
    # sublane+lane, channels become independent slabs.  No transpose, and no
    # pad/slice in the common S % 128 == 0 case.
    pad = (-S) % 128
    x3d = x_nchw.reshape(N, C, S)
    if pad:
        # TODO(synk): spatial not a multiple of 128 -- minimal (<128 col) pad;
        #             a ragged-lane path would avoid this HBM round trip.
        x3d = jnp.pad(x3d, ((0, 0), (0, 0), (0, pad)))
    Sp = S + pad
    R = Sp // 128
    x4d = x3d.reshape(N, C, R, 128)

    # Row tile: big enough (~max_block_bytes per input block) to amortize the
    # ~0.35us per-grid-step cost, a multiple of 8 sublanes (or the full
    # extent), and sized near-evenly so the last tile isn't nearly empty.
    # Double-buffered in+out at the default 2 MiB target is ~8 MiB VMEM.
    max_rt = max(8, max_block_bytes // (C * 128 * itemsize))
    if R <= max_rt:
        rt = R
    else:
        n_tiles = _cdiv(R, max_rt)
        rt = _round_up(_cdiv(R, n_tiles), 8)
    n_row_tiles = _cdiv(R, rt)
    grid = (N, n_row_tiles)

    g32 = g.reshape(C).astype(jnp.float32)
    b32 = b.reshape(C).astype(jnp.float32)
    w32 = w.reshape(C, C).astype(jnp.float32)
    wb32 = wb.reshape(C).astype(jnp.float32)

    out4d = pl.pallas_call(
        prenorm_kernel,
        out_shape=jax.ShapeDtypeStruct((N, C, R, 128), dtype),
        grid_spec=pltpu.PrefetchScalarGridSpec(
            num_scalar_prefetch=0,
            grid=grid,
            in_specs=[
                pl.BlockSpec((1, C, rt, 128), lambda n, s: (n, 0, s, 0)),  # x
                pl.BlockSpec(memory_space=pltpu.MemorySpace.SMEM),         # g
                pl.BlockSpec(memory_space=pltpu.MemorySpace.SMEM),         # b
                pl.BlockSpec(memory_space=pltpu.MemorySpace.SMEM),         # w
                pl.BlockSpec(memory_space=pltpu.MemorySpace.SMEM),         # wb
            ],
            out_specs=pl.BlockSpec((1, C, rt, 128), lambda n, s: (n, 0, s, 0)),
        ),
        compiler_params=pltpu.CompilerParams(
            dimension_semantics=("parallel", "parallel")),
    )(x4d, g32, b32, w32, wb32)

    out3d = out4d.reshape(N, C, Sp)
    if pad:
        out3d = out3d[:, :, :S]
    return out3d.reshape(N, C, H, W)


def prenorm_reference(x, g, b, w, wb):
    """Pure-JAX reference matching the PyTorch module exactly."""
    mean = jnp.mean(x, axis=1, keepdims=True)
    var = jnp.mean((x - mean) ** 2, axis=1, keepdims=True)  # unbiased=False
    y = (x - mean) / jnp.sqrt(var + EPS) * g.reshape(1, -1, 1, 1) \
        + b.reshape(1, -1, 1, 1)
    out = jnp.einsum("nchw,oc->nohw", y, w) + wb.reshape(1, -1, 1, 1)
    return out


if __name__ == "__main__":
    key = jax.random.PRNGKey(0)
    kx, kw, kg, kb, kwb = jax.random.split(key, 5)

    N, C, H, W = 2, 4, 16, 16          # dim = 4
    x = jax.random.normal(kx, (N, C, H, W), dtype=jnp.float32)

    # LayerNorm params (shape as in __init__; perturbed to exercise the path).
    g = 1.0 + 0.1 * jax.random.normal(kg, (C,), dtype=jnp.float32)
    b = 0.1 * jax.random.normal(kb, (C,), dtype=jnp.float32)
    # fn = 1x1 Conv2d(dim, dim): deterministic weights + bias.
    w = jax.random.normal(kw, (C, C), dtype=jnp.float32) * 0.1
    wb = 0.1 * jax.random.normal(kwb, (C,), dtype=jnp.float32)

    out = prenorm_pointwise(x, g, b, w, wb)
    out = jax.block_until_ready(out)

    ref = prenorm_reference(x, g, b, w, wb)
    assert out.shape == (N, C, H, W)
    assert jnp.allclose(out, ref, atol=1e-5, rtol=1e-5), "mismatch vs reference"

    print("KERNEL_OK")
</pallas_src>

<mosaic_0001>
module attributes {stable_mosaic.version = 11 : i64} {
  func.func @prenorm_kernel(%arg0: i32, %arg1: i32, %arg2: memref<1x4x2x128xf32, #tpu.memory_space<vmem>>, %arg3: memref<4xf32, #tpu.memory_space<smem>>, %arg4: memref<4xf32, #tpu.memory_space<smem>>, %arg5: memref<4x4xf32, #tpu.memory_space<smem>>, %arg6: memref<4xf32, #tpu.memory_space<smem>>, %arg7: memref<1x4x2x128xf32, #tpu.memory_space<vmem>>) attributes {dimension_semantics = [#tpu.dimension_semantics<parallel>, #tpu.dimension_semantics<parallel>], iteration_bounds = array<i64: 2, 1>, scalar_prefetch = 0 : i64, scratch_operands = 0 : i64, tpu.core_type = #tpu.core_type<tc>, window_params = [{transform_indices = @transform_0, window_bounds = array<i64: 1, 4, 2, 128>}, {transform_indices = @transform_1, window_bounds = array<i64: 4>}, {transform_indices = @transform_2, window_bounds = array<i64: 4>}, {transform_indices = @transform_3, window_bounds = array<i64: 4, 4>}, {transform_indices = @transform_4, window_bounds = array<i64: 4>}, {transform_indices = @transform_5, window_bounds = array<i64: 1, 4, 2, 128>}]} {
    %c0 = arith.constant 0 : index
    %c0_0 = arith.constant 0 : index
    %c0_1 = arith.constant 0 : index
    %c0_2 = arith.constant 0 : index
    %0 = vector.load %arg2[%c0, %c0_0, %c0_1, %c0_2] : memref<1x4x2x128xf32, #tpu.memory_space<vmem>>, vector<1x1x2x128xf32>
    %1 = vector.shape_cast %0 : vector<1x1x2x128xf32> to vector<2x128xf32>
    %c0_3 = arith.constant 0 : index
    %c1 = arith.constant 1 : index
    %c0_4 = arith.constant 0 : index
    %c0_5 = arith.constant 0 : index
    %2 = vector.load %arg2[%c0_3, %c1, %c0_4, %c0_5] : memref<1x4x2x128xf32, #tpu.memory_space<vmem>>, vector<1x1x2x128xf32>
    %3 = vector.shape_cast %2 : vector<1x1x2x128xf32> to vector<2x128xf32>
    %c0_6 = arith.constant 0 : index
    %c2 = arith.constant 2 : index
    %c0_7 = arith.constant 0 : index
    %c0_8 = arith.constant 0 : index
    %4 = vector.load %arg2[%c0_6, %c2, %c0_7, %c0_8] : memref<1x4x2x128xf32, #tpu.memory_space<vmem>>, vector<1x1x2x128xf32>
    %5 = vector.shape_cast %4 : vector<1x1x2x128xf32> to vector<2x128xf32>
    %c0_9 = arith.constant 0 : index
    %c3 = arith.constant 3 : index
    %c0_10 = arith.constant 0 : index
    %c0_11 = arith.constant 0 : index
    %6 = vector.load %arg2[%c0_9, %c3, %c0_10, %c0_11] : memref<1x4x2x128xf32, #tpu.memory_space<vmem>>, vector<1x1x2x128xf32>
    %7 = vector.shape_cast %6 : vector<1x1x2x128xf32> to vector<2x128xf32>
    %8 = arith.addf %1, %3 : vector<2x128xf32>
    %9 = arith.addf %8, %5 : vector<2x128xf32>
    %10 = arith.addf %9, %7 : vector<2x128xf32>
    %cst = arith.constant 2.500000e-01 : f32
    %11 = vector.broadcast %cst : f32 to vector<2x128xf32>
    %12 = arith.mulf %10, %11 : vector<2x128xf32>
    %13 = arith.subf %1, %12 : vector<2x128xf32>
    %14 = arith.subf %3, %12 : vector<2x128xf32>
    %15 = arith.subf %5, %12 : vector<2x128xf32>
    %16 = arith.subf %7, %12 : vector<2x128xf32>
    %17 = arith.mulf %13, %13 : vector<2x128xf32>
    %18 = arith.mulf %14, %14 : vector<2x128xf32>
    %19 = arith.addf %17, %18 : vector<2x128xf32>
    %20 = arith.mulf %15, %15 : vector<2x128xf32>
    %21 = arith.addf %19, %20 : vector<2x128xf32>
    %22 = arith.mulf %16, %16 : vector<2x128xf32>
    %23 = arith.addf %21, %22 : vector<2x128xf32>
    %cst_12 = arith.constant 2.500000e-01 : f32
    %24 = vector.broadcast %cst_12 : f32 to vector<2x128xf32>
    %25 = arith.mulf %23, %24 : vector<2x128xf32>
    %cst_13 = arith.constant 9.99999974E-6 : f32
    %26 = vector.broadcast %cst_13 : f32 to vector<2x128xf32>
    %27 = arith.addf %25, %26 : vector<2x128xf32>
    %28 = math.rsqrt %27 : vector<2x128xf32>
    %29 = arith.mulf %13, %28 : vector<2x128xf32>
    %c0_14 = arith.constant 0 : index
    %30 = memref.load %arg3[%c0_14] : memref<4xf32, #tpu.memory_space<smem>>
    %31 = vector.broadcast %30 : f32 to vector<2x128xf32>
    %32 = arith.mulf %29, %31 : vector<2x128xf32>
    %c0_15 = arith.constant 0 : index
    %33 = memref.load %arg4[%c0_15] : memref<4xf32, #tpu.memory_space<smem>>
    %34 = vector.broadcast %33 : f32 to vector<2x128xf32>
    %35 = arith.addf %32, %34 : vector<2x128xf32>
    %36 = arith.mulf %14, %28 : vector<2x128xf32>
    %c1_16 = arith.constant 1 : index
    %37 = memref.load %arg3[%c1_16] : memref<4xf32, #tpu.memory_space<smem>>
    %38 = vector.broadcast %37 : f32 to vector<2x128xf32>
    %39 = arith.mulf %36, %38 : vector<2x128xf32>
    %c1_17 = arith.constant 1 : index
    %40 = memref.load %arg4[%c1_17] : memref<4xf32, #tpu.memory_space<smem>>
    %41 = vector.broadcast %40 : f32 to vector<2x128xf32>
    %42 = arith.addf %39, %41 : vector<2x128xf32>
    %43 = arith.mulf %15, %28 : vector<2x128xf32>
    %c2_18 = arith.constant 2 : index
    %44 = memref.load %arg3[%c2_18] : memref<4xf32, #tpu.memory_space<smem>>
    %45 = vector.broadcast %44 : f32 to vector<2x128xf32>
    %46 = arith.mulf %43, %45 : vector<2x128xf32>
    %c2_19 = arith.constant 2 : index
    %47 = memref.load %arg4[%c2_19] : memref<4xf32, #tpu.memory_space<smem>>
    %48 = vector.broadcast %47 : f32 to vector<2x128xf32>
    %49 = arith.addf %46, %48 : vector<2x128xf32>
    %50 = arith.mulf %16, %28 : vector<2x128xf32>
    %c3_20 = arith.constant 3 : index
    %51 = memref.load %arg3[%c3_20] : memref<4xf32, #tpu.memory_space<smem>>
    %52 = vector.broadcast %51 : f32 to vector<2x128xf32>
    %53 = arith.mulf %50, %52 : vector<2x128xf32>
    %c3_21 = arith.constant 3 : index
    %54 = memref.load %arg4[%c3_21] : memref<4xf32, #tpu.memory_space<smem>>
    %55 = vector.broadcast %54 : f32 to vector<2x128xf32>
    %56 = arith.addf %53, %55 : vector<2x128xf32>
    %c0_22 = arith.constant 0 : index
    %c0_23 = arith.constant 0 : index
    %57 = memref.load %arg5[%c0_22, %c0_23] : memref<4x4xf32, #tpu.memory_space<smem>>
    %58 = vector.broadcast %57 : f32 to vector<2x128xf32>
    %59 = arith.mulf %35, %58 : vector<2x128xf32>
    %c0_24 = arith.constant 0 : index
    %c1_25 = arith.constant 1 : index
    %60 = memref.load %arg5[%c0_24, %c1_25] : memref<4x4xf32, #tpu.memory_space<smem>>
    %61 = vector.broadcast %60 : f32 to vector<2x128xf32>
    %62 = arith.mulf %42, %61 : vector<2x128xf32>
    %63 = arith.addf %59, %62 : vector<2x128xf32>
    %c0_26 = arith.constant 0 : index
    %c2_27 = arith.constant 2 : index
    %64 = memref.load %arg5[%c0_26, %c2_27] : memref<4x4xf32, #tpu.memory_space<smem>>
    %65 = vector.broadcast %64 : f32 to vector<2x128xf32>
    %66 = arith.mulf %49, %65 : vector<2x128xf32>
    %67 = arith.addf %63, %66 : vector<2x128xf32>
    %c0_28 = arith.constant 0 : index
    %c3_29 = arith.constant 3 : index
    %68 = memref.load %arg5[%c0_28, %c3_29] : memref<4x4xf32, #tpu.memory_space<smem>>
    %69 = vector.broadcast %68 : f32 to vector<2x128xf32>
    %70 = arith.mulf %56, %69 : vector<2x128xf32>
    %71 = arith.addf %67, %70 : vector<2x128xf32>
    %c0_30 = arith.constant 0 : index
    %72 = memref.load %arg6[%c0_30] : memref<4xf32, #tpu.memory_space<smem>>
    %73 = vector.broadcast %72 : f32 to vector<2x128xf32>
    %74 = arith.addf %71, %73 : vector<2x128xf32>
    %c0_31 = arith.constant 0 : index
    %c0_32 = arith.constant 0 : index
    %c0_33 = arith.constant 0 : index
    %c0_34 = arith.constant 0 : index
    %75 = vector.load %arg7[%c0_31, %c0_32, %c0_33, %c0_34] : memref<1x4x2x128xf32, #tpu.memory_space<vmem>>, vector<1x1x2x128xf32>
    %76 = vector.shape_cast %75 : vector<1x1x2x128xf32> to vector<2x128xf32>
    %77 = vector.shape_cast %74 : vector<2x128xf32> to vector<1x1x2x128xf32>
    tpu.vector_store %arg7[%c0_31, %c0_32, %c0_33, %c0_34], %77 {strides = array<i32>} : memref<1x4x2x128xf32, #tpu.memory_space<vmem>>, vector<1x1x2x128xf32>,
    %c1_35 = arith.constant 1 : index
    %c0_36 = arith.constant 0 : index
    %78 = memref.load %arg5[%c1_35, %c0_36] : memref<4x4xf32, #tpu.memory_space<smem>>
    %79 = vector.broadcast %78 : f32 to vector<2x128xf32>
    %80 = arith.mulf %35, %79 : vector<2x128xf32>
    %c1_37 = arith.constant 1 : index
    %c1_38 = arith.constant 1 : index
    %81 = memref.load %arg5[%c1_37, %c1_38] : memref<4x4xf32, #tpu.memory_space<smem>>
    %82 = vector.broadcast %81 : f32 to vector<2x128xf32>
    %83 = arith.mulf %42, %82 : vector<2x128xf32>
    %84 = arith.addf %80, %83 : vector<2x128xf32>
    %c1_39 = arith.constant 1 : index
    %c2_40 = arith.constant 2 : index
    %85 = memref.load %arg5[%c1_39, %c2_40] : memref<4x4xf32, #tpu.memory_space<smem>>
    %86 = vector.broadcast %85 : f32 to vector<2x128xf32>
    %87 = arith.mulf %49, %86 : vector<2x128xf32>
    %88 = arith.addf %84, %87 : vector<2x128xf32>
    %c1_41 = arith.constant 1 : index
    %c3_42 = arith.constant 3 : index
    %89 = memref.load %arg5[%c1_41, %c3_42] : memref<4x4xf32, #tpu.memory_space<smem>>
    %90 = vector.broadcast %89 : f32 to vector<2x128xf32>
    %91 = arith.mulf %56, %90 : vector<2x128xf32>
    %92 = arith.addf %88, %91 : vector<2x128xf32>
    %c1_43 = arith.constant 1 : index
    %93 = memref.load %arg6[%c1_43] : memref<4xf32, #tpu.memory_space<smem>>
    %94 = vector.broadcast %93 : f32 to vector<2x128xf32>
    %95 = arith.addf %92, %94 : vector<2x128xf32>
    %c0_44 = arith.constant 0 : index
    %c1_45 = arith.constant 1 : index
    %c0_46 = arith.constant 0 : index
    %c0_47 = arith.constant 0 : index
    %96 = vector.load %arg7[%c0_44, %c1_45, %c0_46, %c0_47] : memref<1x4x2x128xf32, #tpu.memory_space<vmem>>, vector<1x1x2x128xf32>
    %97 = vector.shape_cast %96 : vector<1x1x2x128xf32> to vector<2x128xf32>
    %98 = vector.shape_cast %95 : vector<2x128xf32> to vector<1x1x2x128xf32>
    tpu.vector_store %arg7[%c0_44, %c1_45, %c0_46, %c0_47], %98 {strides = array<i32>} : memref<1x4x2x128xf32, #tpu.memory_space<vmem>>, vector<1x1x2x128xf32>,
    %c2_48 = arith.constant 2 : index
    %c0_49 = arith.constant 0 : index
    %99 = memref.load %arg5[%c2_48, %c0_49] : memref<4x4xf32, #tpu.memory_space<smem>>
    %100 = vector.broadcast %99 : f32 to vector<2x128xf32>
    %101 = arith.mulf %35, %100 : vector<2x128xf32>
    %c2_50 = arith.constant 2 : index
    %c1_51 = arith.constant 1 : index
    %102 = memref.load %arg5[%c2_50, %c1_51] : memref<4x4xf32, #tpu.memory_space<smem>>
    %103 = vector.broadcast %102 : f32 to vector<2x128xf32>
    %104 = arith.mulf %42, %103 : vector<2x128xf32>
    %105 = arith.addf %101, %104 : vector<2x128xf32>
    %c2_52 = arith.constant 2 : index
    %c2_53 = arith.constant 2 : index
    %106 = memref.load %arg5[%c2_52, %c2_53] : memref<4x4xf32, #tpu.memory_space<smem>>
    %107 = vector.broadcast %106 : f32 to vector<2x128xf32>
    %108 = arith.mulf %49, %107 : vector<2x128xf32>
    %109 = arith.addf %105, %108 : vector<2x128xf32>
    %c2_54 = arith.constant 2 : index
    %c3_55 = arith.constant 3 : index
    %110 = memref.load %arg5[%c2_54, %c3_55] : memref<4x4xf32, #tpu.memory_space<smem>>
    %111 = vector.broadcast %110 : f32 to vector<2x128xf32>
    %112 = arith.mulf %56, %111 : vector<2x128xf32>
    %113 = arith.addf %109, %112 : vector<2x128xf32>
    %c2_56 = arith.constant 2 : index
    %114 = memref.load %arg6[%c2_56] : memref<4xf32, #tpu.memory_space<smem>>
    %115 = vector.broadcast %114 : f32 to vector<2x128xf32>
    %116 = arith.addf %113, %115 : vector<2x128xf32>
    %c0_57 = arith.constant 0 : index
    %c2_58 = arith.constant 2 : index
    %c0_59 = arith.constant 0 : index
    %c0_60 = arith.constant 0 : index
    %117 = vector.load %arg7[%c0_57, %c2_58, %c0_59, %c0_60] : memref<1x4x2x128xf32, #tpu.memory_space<vmem>>, vector<1x1x2x128xf32>
    %118 = vector.shape_cast %117 : vector<1x1x2x128xf32> to vector<2x128xf32>
    %119 = vector.shape_cast %116 : vector<2x128xf32> to vector<1x1x2x128xf32>
    tpu.vector_store %arg7[%c0_57, %c2_58, %c0_59, %c0_60], %119 {strides = array<i32>} : memref<1x4x2x128xf32, #tpu.memory_space<vmem>>, vector<1x1x2x128xf32>,
    %c3_61 = arith.constant 3 : index
    %c0_62 = arith.constant 0 : index
    %120 = memref.load %arg5[%c3_61, %c0_62] : memref<4x4xf32, #tpu.memory_space<smem>>
    %121 = vector.broadcast %120 : f32 to vector<2x128xf32>
    %122 = arith.mulf %35, %121 : vector<2x128xf32>
    %c3_63 = arith.constant 3 : index
    %c1_64 = arith.constant 1 : index
    %123 = memref.load %arg5[%c3_63, %c1_64] : memref<4x4xf32, #tpu.memory_space<smem>>
    %124 = vector.broadcast %123 : f32 to vector<2x128xf32>
    %125 = arith.mulf %42, %124 : vector<2x128xf32>
    %126 = arith.addf %122, %125 : vector<2x128xf32>
    %c3_65 = arith.constant 3 : index
    %c2_66 = arith.constant 2 : index
    %127 = memref.load %arg5[%c3_65, %c2_66] : memref<4x4xf32, #tpu.memory_space<smem>>
    %128 = vector.broadcast %127 : f32 to vector<2x128xf32>
    %129 = arith.mulf %49, %128 : vector<2x128xf32>
    %130 = arith.addf %126, %129 : vector<2x128xf32>
    %c3_67 = arith.constant 3 : index
    %c3_68 = arith.constant 3 : index
    %131 = memref.load %arg5[%c3_67, %c3_68] : memref<4x4xf32, #tpu.memory_space<smem>>
    %132 = vector.broadcast %131 : f32 to vector<2x128xf32>
    %133 = arith.mulf %56, %132 : vector<2x128xf32>
    %134 = arith.addf %130, %133 : vector<2x128xf32>
    %c3_69 = arith.constant 3 : index
    %135 = memref.load %arg6[%c3_69] : memref<4xf32, #tpu.memory_space<smem>>
    %136 = vector.broadcast %135 : f32 to vector<2x128xf32>
    %137 = arith.addf %134, %136 : vector<2x128xf32>
    %c0_70 = arith.constant 0 : index
    %c3_71 = arith.constant 3 : index
    %c0_72 = arith.constant 0 : index
    %c0_73 = arith.constant 0 : index
    %138 = vector.load %arg7[%c0_70, %c3_71, %c0_72, %c0_73] : memref<1x4x2x128xf32, #tpu.memory_space<vmem>>, vector<1x1x2x128xf32>
    %139 = vector.shape_cast %138 : vector<1x1x2x128xf32> to vector<2x128xf32>
    %140 = vector.shape_cast %137 : vector<2x128xf32> to vector<1x1x2x128xf32>
    tpu.vector_store %arg7[%c0_70, %c3_71, %c0_72, %c0_73], %140 {strides = array<i32>} : memref<1x4x2x128xf32, #tpu.memory_space<vmem>>, vector<1x1x2x128xf32>,
    return
  }
  func.func @transform_0(%arg0: i32, %arg1: i32) -> (i32, i32, i32, i32) {
    %c0_i32 = arith.constant 0 : i32
    %c0_i32_0 = arith.constant 0 : i32
    %c0_i32_1 = arith.constant 0 : i32
    return %arg0, %c0_i32, %arg1, %c0_i32_0 : i32, i32, i32, i32
  }
  func.func @transform_1(%arg0: i32, %arg1: i32) -> i32 {
    %c0_i32 = arith.constant 0 : i32
    %c0_i32_0 = arith.constant 0 : i32
    return %c0_i32 : i32
  }
  func.func @transform_2(%arg0: i32, %arg1: i32) -> i32 {
    %c0_i32 = arith.constant 0 : i32
    %c0_i32_0 = arith.constant 0 : i32
    return %c0_i32 : i32
  }
  func.func @transform_3(%arg0: i32, %arg1: i32) -> (i32, i32) {
    %c0_i32 = arith.constant 0 : i32
    %c0_i32_0 = arith.constant 0 : i32
    %c0_i32_1 = arith.constant 0 : i32
    return %c0_i32, %c0_i32_0 : i32, i32
  }
  func.func @transform_4(%arg0: i32, %arg1: i32) -> i32 {
    %c0_i32 = arith.constant 0 : i32
    %c0_i32_0 = arith.constant 0 : i32
    return %c0_i32 : i32
  }
  func.func @transform_5(%arg0: i32, %arg1: i32) -> (i32, i32, i32, i32) {
    %c0_i32 = arith.constant 0 : i32
    %c0_i32_0 = arith.constant 0 : i32
    %c0_i32_1 = arith.constant 0 : i32
    return %arg0, %c0_i32, %arg1, %c0_i32_0 : i32, i32, i32, i32
  }
}

</mosaic_0001>

<llo_original>
// kernel: tpu_custom_call.1
$region0: #{tpu_custom_call.1}
  #allocation0 [shape = 'u32[]', space=smem, size = 0x4, offset = 0x4, fixed_abs, tag = 'smem constant byte address 0x4 - core index']
  #allocation1 [shape = 'u32[72,128]{1,0:T(1,128)}', space=vmem, size = 0x9000, scoped, tag = 'internal scratch']
  %s0 = inlined_call_operand.hbm [shape: f32[2,4,2,128], index: 0, kind: input, shape index: {}]
  %s1 = inlined_call_operand.hbm [shape: f32[4], index: 1, kind: input, shape index: {}]
  %s2 = inlined_call_operand.vmem [shape: f32[4], index: 2, kind: input, shape index: {}]
  %s3 = inlined_call_operand.hbm [shape: f32[4,4], index: 3, kind: input, shape index: {}]
  %s4 = inlined_call_operand.vmem [shape: f32[4], index: 4, kind: input, shape index: {}]
  %s5 = inlined_call_operand.hbm [shape: f32[2,4,2,128], index: 5, kind: output, shape index: {}]
  %s6 = sld [smem:[#allocation0]]
  $region73: #{tpu_custom_call.1} parent=0
    _
  %s8 = ssub.s32 1, %s6
  %s9 = scalar_select 0, %s8, %s6
  $region1: #{tpu_custom_call.1} parent=0
    #allocation2 [shape = 'u8[8192]{0}', space=vmem, size = 0x2000, scoped, tag = 'input window, operand 0']
    #allocation3 [shape = 's32[2]{0}', space=sflag, size = 0x8, scoped, tag = 'scoped memory for tpu_custom_call.1']
    #allocation4 [shape = 's32[2]{0}', space=sflag, size = 0x8, scoped, tag = 'scoped memory for tpu_custom_call.1']
    #allocation5 [shape = 's32[2]{0}', space=sflag, size = 0x8, scoped, tag = 'scoped memory for tpu_custom_call.1']
    #allocation6 [shape = 's32[2]{0}', space=sflag, size = 0x8, scoped, tag = 'scoped memory for tpu_custom_call.1']
    #allocation7 [shape = 'u8[512]{0}', space=smem, size = 0x200, scoped, tag = 'input window, operand 1, single buffered']
    #allocation8 [shape = 'u8[512]{0}', space=smem, size = 0x200, scoped, tag = 'input window, operand 2, single buffered']
    #allocation9 [shape = 'u8[2048]{0}', space=smem, size = 0x800, scoped, tag = 'input window, operand 3, single buffered']
    #allocation10 [shape = 's32[1]{0}', space=sflag, size = 0x4, scoped, tag = 'scoped memory for tpu_custom_call.1']
    #allocation11 [shape = 'u8[512]{0}', space=smem, size = 0x200, scoped, tag = 'input window, operand 4, single buffered']
    #allocation12 [shape = 's32[1]{0}', space=sflag, size = 0x4, scoped, tag = 'scoped memory for tpu_custom_call.1']
    #allocation13 [shape = 'u8[8192]{0}', space=vmem, size = 0x2000, scoped, tag = 'output window, operand 0']
    %10 = vsyncpa [#allocation3], 0
    %s11 = scalar_lea.sflag [#allocation3], 1
    %12 = vsyncpa %s11, 0
    %13 = vsyncpa [#allocation5], 0
    %14 = vsyncpa [#allocation6], 0
    %15 = vsyncpa [#allocation10], 0
    %16 = vsyncpa [#allocation12], 0
    %17 = vsyncpa [#allocation4], 0
    %s18 = scalar_lea.sflag [#allocation4], 1
    %19 = vsyncpa %s18, 0
    loop: start=0, step=1, limit=4
    $region2: #{tpu_custom_call.1} parent=1 // loop_pre_header
      _
    $region3: #{tpu_custom_call.1} parent=1 // loop_header
      %s21 = sphi 0, %s25
      %p22 = scmp.ge.s32.totalorder %s21, 4
      %s28 = sphi 0, %s40
      %s29 = sphi 0, %s36
      %s30 = sphi 0, %s28
      %s31 = sphi 0, %s29
      %s32 = sphi 0, %s30
      %s33 = sphi 0, %s31
      %s45 = sphi 0, %s47
      %s48 = sphi 0, %s45
      %s49 = sphi 0, %s48
      %s65 = sphi 0, %s49
      %s69 = sphi 0, %s69
      %s71 = sphi 0, %s69
      %s72 = sphi 0, %s71
      %s86 = sphi 0, %s72
      %s90 = sphi 0, %s90
      %s92 = sphi 0, %s90
      %s93 = sphi 0, %s92
      %s107 = sphi 0, %s93
      %s111 = sphi 0, %s111
      %s113 = sphi 0, %s111
      %s114 = sphi 0, %s113
      %s128 = sphi 0, %s114
      %s132 = sphi 0, %s132
      %s134 = sphi 0, %s132
      %s135 = sphi 0, %s134
      %s149 = sphi 0, %s135
      %s157 = sphi 0, %s159
      %s160 = sphi 0, %s157
      %s161 = sphi 0, %s160
      %s177 = sphi 0, %s161
    $region4: #{tpu_custom_call.1} parent=1 // loop_header_branch
      %24 = sbr.rel (%p22) target = $region8
    $region5: #{tpu_custom_call.1} parent=1 // loop_body
      %s26 = ssub.s32 %s21, 1
      %s27 = ssub.s32 %s21, 2
      %s34 = sadd.s32 1, %s29
      %p35 = scmp.ge.s32.totalorder %s34, 1
      %s36 = scalar_select %p35, 0, %s34
      %s37 = sadd.s32 1, %s28
      %s38 = scalar_select %p35, %s37, %s28
      %p39 = scmp.ge.s32.totalorder %s38, 2
      %s40 = scalar_select %p39, 0, %s38
      %s41 = ssub.s32 %s28, %s40
      %s42 = ssub.s32 %s29, %s36
      %s43 = sor.u32 %s41, %s42
      %p44 = scmp.eq.s32.totalorder %s43, 0
      %s46 = sadd.s32 %s45, 1
      %s47 = scalar_select %p44, %s45, %s46
      %p50 = pneg %p44
      %p51 = scmp.eq.s32.totalorder %s21, 1
      %p52 = por %p50, %p51
      %p53 = scmp.ne.s32.totalorder %s45, %s48
      %p54 = scmp.eq.s32.totalorder %s21, 0
      %p55 = por %p53, %p54
      %p56 = scmp.ne.s32.totalorder %s45, %s48
      %p57 = scmp.eq.s32.totalorder %s26, 1
      %p58 = por %p56, %p57
      %p59 = scmp.ne.s32.totalorder %s48, %s49
      %p60 = scmp.eq.s32.totalorder %s26, 0
      %p61 = por %p59, %p60
      %p62 = scmp.ne.s32.totalorder %s48, %s49
      %p63 = scmp.eq.s32.totalorder %s27, 1
      %p64 = por %p62, %p63
      %p66 = scmp.ne.s32.totalorder %s49, %s65
      %p67 = scmp.eq.s32.totalorder %s27, 0
      %p68 = por %p66, %p67
      %s70 = sadd.s32 %s69, 1
      %p73 = scmp.eq.s32.totalorder %s21, 1
      %p74 = scmp.ne.s32.totalorder %s69, %s71
      %p75 = scmp.eq.s32.totalorder %s21, 0
      %p76 = por %p74, %p75
      %p77 = scmp.ne.s32.totalorder %s69, %s71
      %p78 = scmp.eq.s32.totalorder %s26, 1
      %p79 = por %p77, %p78
      %p80 = scmp.ne.s32.totalorder %s71, %s72
      %p81 = scmp.eq.s32.totalorder %s26, 0
      %p82 = por %p80, %p81
      %p83 = scmp.ne.s32.totalorder %s71, %s72
      %p84 = scmp.eq.s32.totalorder %s27, 1
      %p85 = por %p83, %p84
      %p87 = scmp.ne.s32.totalorder %s72, %s86
      %p88 = scmp.eq.s32.totalorder %s27, 0
      %p89 = por %p87, %p88
      %s91 = sadd.s32 %s90, 1
      %p94 = scmp.eq.s32.totalorder %s21, 1
      %p95 = scmp.ne.s32.totalorder %s90, %s92
      %p96 = scmp.eq.s32.totalorder %s21, 0
      %p97 = por %p95, %p96
      %p98 = scmp.ne.s32.totalorder %s90, %s92
      %p99 = scmp.eq.s32.totalorder %s26, 1
      %p100 = por %p98, %p99
      %p101 = scmp.ne.s32.totalorder %s92, %s93
      %p102 = scmp.eq.s32.totalorder %s26, 0
      %p103 = por %p101, %p102
      %p104 = scmp.ne.s32.totalorder %s92, %s93
      %p105 = scmp.eq.s32.totalorder %s27, 1
      %p106 = por %p104, %p105
      %p108 = scmp.ne.s32.totalorder %s93, %s107
      %p109 = scmp.eq.s32.totalorder %s27, 0
      %p110 = por %p108, %p109
      %s112 = sadd.s32 %s111, 1
      %p115 = scmp.eq.s32.totalorder %s21, 1
      %p116 = scmp.ne.s32.totalorder %s111, %s113
      %p117 = scmp.eq.s32.totalorder %s21, 0
      %p118 = por %p116, %p117
      %p119 = scmp.ne.s32.totalorder %s111, %s113
      %p120 = scmp.eq.s32.totalorder %s26, 1
      %p121 = por %p119, %p120
      %p122 = scmp.ne.s32.totalorder %s113, %s114
      %p123 = scmp.eq.s32.totalorder %s26, 0
      %p124 = por %p122, %p123
      %p125 = scmp.ne.s32.totalorder %s113, %s114
      %p126 = scmp.eq.s32.totalorder %s27, 1
      %p127 = por %p125, %p126
      %p129 = scmp.ne.s32.totalorder %s114, %s128
      %p130 = scmp.eq.s32.totalorder %s27, 0
      %p131 = por %p129, %p130
      %s133 = sadd.s32 %s132, 1
      %p136 = scmp.eq.s32.totalorder %s21, 1
      %p137 = scmp.ne.s32.totalorder %s132, %s134
      %p138 = scmp.eq.s32.totalorder %s21, 0
      %p139 = por %p137, %p138
      %p140 = scmp.ne.s32.totalorder %s132, %s134
      %p141 = scmp.eq.s32.totalorder %s26, 1
      %p142 = por %p140, %p141
      %p143 = scmp.ne.s32.totalorder %s134, %s135
      %p144 = scmp.eq.s32.totalorder %s26, 0
      %p145 = por %p143, %p144
      %p146 = scmp.ne.s32.totalorder %s134, %s135
      %p147 = scmp.eq.s32.totalorder %s27, 1
      %p148 = por %p146, %p147
      %p150 = scmp.ne.s32.totalorder %s135, %s149
      %p151 = scmp.eq.s32.totalorder %s27, 0
      %p152 = por %p150, %p151
      %s153 = ssub.s32 %s28, %s40
      %s154 = ssub.s32 %s29, %s36
      %s155 = sor.u32 %s153, %s154
      %p156 = scmp.eq.s32.totalorder %s155, 0
      %s158 = sadd.s32 %s157, 1
      %s159 = scalar_select %p156, %s157, %s158
      %p162 = pneg %p156
      %p163 = scmp.eq.s32.totalorder %s21, 1
      %p164 = por %p162, %p163
      %p165 = scmp.ne.s32.totalorder %s157, %s160
      %p166 = scmp.eq.s32.totalorder %s21, 0
      %p167 = por %p165, %p166
      %p168 = scmp.ne.s32.totalorder %s157, %s160
      %p169 = scmp.eq.s32.totalorder %s26, 1
      %p170 = por %p168, %p169
      %p171 = scmp.ne.s32.totalorder %s160, %s161
      %p172 = scmp.eq.s32.totalorder %s26, 0
      %p173 = por %p171, %p172
      %p174 = scmp.ne.s32.totalorder %s160, %s161
      %p175 = scmp.eq.s32.totalorder %s27, 1
      %p176 = por %p174, %p175
      %p178 = scmp.ne.s32.totalorder %s161, %s177
      %p179 = scmp.eq.s32.totalorder %s27, 0
      %p180 = por %p178, %p179
      %p181 = scmp.le.s32.totalorder 1, %s21
      %p182 = scmp.lt.s32.totalorder %s21, 3
      %p183 = pnand %p181, %p182
      %p184 = pneg %p183
      // Predicated region
      $region9: #{tpu_custom_call.1} parent=5 // pred_check
        _
      $region10: #{tpu_custom_call.1} parent=5 // pred_check_branch
        %186 = sbr.rel (%p183) target = $region12
      $region11: #{tpu_custom_call.1} parent=5 // pred_region
        %s187 = ssub.s32 %s21, 1
        // Predicated region
        $region13: #{tpu_custom_call.1} parent=11 // pred_check
          %p188 = pneg %p82
        $region14: #{tpu_custom_call.1} parent=11 // pred_check_branch
          %190 = sbr.rel (%p188) target = $region16
        $region15: #{tpu_custom_call.1} parent=11 // pred_region
          %192 = vsyncadd [#allocation5], 0
          %s194 = sshll.u32 %s1, 4
          %s195 = int_to_ptr.hbm [resolvable:$true] %s194
          %197 = dma.hbm_to_smem %s195, 16, [#allocation7], [#allocation5]
        $region16: #{tpu_custom_call.1} parent=11 // pred_fallthru
          _
        // Predicated region
        $region17: #{tpu_custom_call.1} parent=11 // pred_check
          %p198 = pneg %p103
        $region18: #{tpu_custom_call.1} parent=11 // pred_check_branch
          %200 = sbr.rel (%p198) target = $region20
        $region19: #{tpu_custom_call.1} parent=11 // pred_region
          %202 = vsyncadd [#allocation6], 0
          %s204 = sshll.u32 %s2, 4
          %s205 = int_to_ptr.vmem [resolvable:$true] %s204
          %207 = dma.vmem_to_smem %s205, 16, [#allocation8], [#allocation6]
        $region20: #{tpu_custom_call.1} parent=11 // pred_fallthru
          _
        // Predicated region
        $region21: #{tpu_custom_call.1} parent=11 // pred_check
          %p208 = pneg %p124
        $region22: #{tpu_custom_call.1} parent=11 // pred_check_branch
          %210 = sbr.rel (%p208) target = $region24
        $region23: #{tpu_custom_call.1} parent=11 // pred_region
          %212 = vsyncadd [#allocation10], 0
          %s214 = sshll.u32 %s3, 4
          %s215 = int_to_ptr.hbm [resolvable:$true] %s214
          %217 = dma.hbm_to_smem %s215, 64, [#allocation9], [#allocation10]
        $region24: #{tpu_custom_call.1} parent=11 // pred_fallthru
          _
        // Predicated region
        $region25: #{tpu_custom_call.1} parent=11 // pred_check
          %p218 = pneg %p145
        $region26: #{tpu_custom_call.1} parent=11 // pred_check_branch
          %220 = sbr.rel (%p218) target = $region28
        $region27: #{tpu_custom_call.1} parent=11 // pred_region
          %222 = vsyncadd [#allocation12], 0
          %s224 = sshll.u32 %s4, 4
          %s225 = int_to_ptr.vmem [resolvable:$true] %s224
          %227 = dma.vmem_to_smem %s225, 16, [#allocation11], [#allocation12]
        $region28: #{tpu_custom_call.1} parent=11 // pred_fallthru
          _
      $region12: #{tpu_custom_call.1} parent=5 // pred_fallthru
        _
      %p228 = scmp.lt.s32.totalorder %s21, 2
      // Predicated region
      $region29: #{tpu_custom_call.1} parent=5 // pred_check
        %p229 = pneg %p228
      $region30: #{tpu_custom_call.1} parent=5 // pred_check_branch
        %231 = sbr.rel (%p229) target = $region32
      $region31: #{tpu_custom_call.1} parent=5 // pred_region
        // Predicated region
        $region33: #{tpu_custom_call.1} parent=31 // pred_check
          %p232 = pneg %p55
        $region34: #{tpu_custom_call.1} parent=31 // pred_check_branch
          %234 = sbr.rel (%p232) target = $region36
        $region35: #{tpu_custom_call.1} parent=31 // pred_region
          %s235 = sand.u32 %s45, 1
          %s236 = scalar_lea.sflag [#allocation3], %s235
          %s237 = sand.u32 %s45, 1
          %s238 = smul.addr %s237, 8
          %s239 = scalar_lea.vmem [#allocation2], %s238
          %241 = vsyncadd %s236, 0
          %s242 = smul.addr %s28, 4
          %s243 = sadd.s32 %s29, %s242
          %s244 = smul.addr %s243, 2
          %s245 = scalar_lea.hbm %s0, %s244
          %s246 = sshll.u32 %s245, 4
          %s247 = int_to_ptr.hbm [resolvable:$true] %s246
          %s248 = sshll.u32 %s239, 4
          %s249 = int_to_ptr.vmem [resolvable:$true] %s248
          %254 = dma.hbm_to_vmem [thread:$0]  %s247, 128, %s249, %s236, 32, 32, 2
        $region36: #{tpu_custom_call.1} parent=31 // pred_fallthru
          _
      $region32: #{tpu_custom_call.1} parent=5 // pred_fallthru
        _
      %p255 = scmp.le.s32.totalorder 1, %s21
      %p256 = scmp.lt.s32.totalorder %s21, 3
      %p257 = pnand %p255, %p256
      %p258 = pneg %p257
      // Predicated region
      $region37: #{tpu_custom_call.1} parent=5 // pred_check
        _
      $region38: #{tpu_custom_call.1} parent=5 // pred_check_branch
        %260 = sbr.rel (%p257) target = $region40
      $region39: #{tpu_custom_call.1} parent=5 // pred_region
        %s261 = ssub.s32 %s21, 1
        %s262 = sand.u32 %s48, 1
        %s263 = scalar_lea.sflag [#allocation3], %s262
        %s264 = sand.u32 %s48, 1
        %s265 = smul.addr %s264, 8
        %s266 = scalar_lea.vmem [#allocation2], %s265
        // Predicated region
        $region41: #{tpu_custom_call.1} parent=39 // pred_check
          %p267 = pneg %p61
        $region42: #{tpu_custom_call.1} parent=39 // pred_check_branch
          %269 = sbr.rel (%p267) target = $region44
        $region43: #{tpu_custom_call.1} parent=39 // pred_region
          %271 = dma.done %s263, 128
        $region44: #{tpu_custom_call.1} parent=39 // pred_fallthru
          _
        // Predicated region
        $region45: #{tpu_custom_call.1} parent=39 // pred_check
          %p272 = pneg %p82
        $region46: #{tpu_custom_call.1} parent=39 // pred_check_branch
          %274 = sbr.rel (%p272) target = $region48
        $region47: #{tpu_custom_call.1} parent=39 // pred_region
          %276 = dma.done [#allocation5], 16
        $region48: #{tpu_custom_call.1} parent=39 // pred_fallthru
          _
        // Predicated region
        $region49: #{tpu_custom_call.1} parent=39 // pred_check
          %p277 = pneg %p103
        $region50: #{tpu_custom_call.1} parent=39 // pred_check_branch
          %279 = sbr.rel (%p277) target = $region52
        $region51: #{tpu_custom_call.1} parent=39 // pred_region
          %281 = dma.done [#allocation6], 16
        $region52: #{tpu_custom_call.1} parent=39 // pred_fallthru
          _
        // Predicated region
        $region53: #{tpu_custom_call.1} parent=39 // pred_check
          %p282 = pneg %p124
        $region54: #{tpu_custom_call.1} parent=39 // pred_check_branch
          %284 = sbr.rel (%p282) target = $region56
        $region55: #{tpu_custom_call.1} parent=39 // pred_region
          %286 = dma.done [#allocation10], 64
        $region56: #{tpu_custom_call.1} parent=39 // pred_fallthru
          _
        // Predicated region
        $region57: #{tpu_custom_call.1} parent=39 // pred_check
          %p287 = pneg %p145
        $region58: #{tpu_custom_call.1} parent=39 // pred_check_branch
          %289 = sbr.rel (%p287) target = $region60
        $region59: #{tpu_custom_call.1} parent=39 // pred_region
          %291 = dma.done [#allocation12], 16
        $region60: #{tpu_custom_call.1} parent=39 // pred_fallthru
          _
        %292 = sfence
        %s293 = sand.u32 %s48, 1
        %s294 = scalar_lea.sflag [#allocation3], %s293
        %s295 = sand.u32 %s48, 1
        %s296 = smul.addr %s295, 8
        %s297 = scalar_lea.vmem [#allocation2], %s296
        %p298 = pneg %p61
        %p299 = pneg %p58
        %p300 = pneg %p82
        %p301 = pneg %p79
        %p302 = pneg %p103
        %p303 = pneg %p100
        %p304 = pneg %p124
        %p305 = pneg %p121
        %p306 = pneg %p145
        %p307 = pneg %p142
        %p308 = pneg %p173
        %p309 = pneg %p170
        %s310 = sand.u32 %s160, 1
        %s311 = scalar_lea.sflag [#allocation4], %s310
        %s312 = sand.u32 %s160, 1
        %s313 = smul.addr %s312, 8
        %s314 = scalar_lea.vmem [#allocation13], %s313
        %v315 = vld [vmem:[%s266] sm:$0x3]
        %s316 = scalar_lea.vmem %s266, 2 [#allocation2]
        %v317 = vld [vmem:[%s316] sm:$0x3]
        %s318 = scalar_lea.vmem %s266, 4 [#allocation2]
        %v319 = vld [vmem:[%s318] sm:$0x3]
        %s320 = scalar_lea.vmem %s266, 6 [#allocation2]
        %v321 = vld [vmem:[%s320] sm:$0x3]
        %v322 = vadd.f32 %v315, %v317
        %v323 = vadd.f32 %v322, %v319
        %v324 = vadd.f32 %v323, %v321
        %v325 = vmul.f32 %v324, 0.25
        %v326 = vsub.f32 %v315, %v325
        %v327 = vsub.f32 %v317, %v325
        %v328 = vsub.f32 %v319, %v325
        %v329 = vsub.f32 %v321, %v325
        %v330 = vmul.f32 %v326, %v326
        %v331 = vmul.f32 %v327, %v327
        %v332 = vadd.f32 %v330, %v331
        %v333 = vmul.f32 %v328, %v328
        %v334 = vadd.f32 %v332, %v333
        %v335 = vmul.f32 %v329, %v329
        %v336 = vadd.f32 %v334, %v335
        %v337 = vmul.f32 %v336, 0.25
        %v338 = vadd.f32 %v337, 1e-05
        %v339 = vrsqrt.pop %v338
        %v340 = vmul.f32 %v339, %v338
        %v341 = vmul.f32 %v340, %v339
        %v342 = vmul.f32 0.5, %v341
        %v343 = vsub.f32 1.5, %v342
        %v344 = vmul.f32 %v339, %v343
        %vm345 = vweird.f32 %v338
        %vm346 = vweird.f32 %v339
        %vm347 = vmor %vm345, %vm346
        %v348 = vsel %vm347, %v339, %v344
        %v349 = vmul.f32 %v326, %v348
        %s350 = sld [smem:[#allocation7]]
        %v351 = vstv %s350
        %v352 = vmul.f32 %v349, %v351
        %s353 = sld [smem:[#allocation8]]
        %v354 = vstv %s353
        %v355 = vadd.f32 %v352, %v354
        %v356 = vmul.f32 %v327, %v348
        %s357 = sld [smem:[#allocation7 + $0x1]]
        %v358 = vstv %s357
        %v359 = vmul.f32 %v356, %v358
        %s360 = sld [smem:[#allocation8 + $0x1]]
        %v361 = vstv %s360
        %v362 = vadd.f32 %v359, %v361
        %v363 = vmul.f32 %v328, %v348
        %s364 = sld [smem:[#allocation7 + $0x2]]
        %v365 = vstv %s364
        %v366 = vmul.f32 %v363, %v365
        %s367 = sld [smem:[#allocation8 + $0x2]]
        %v368 = vstv %s367
        %v369 = vadd.f32 %v366, %v368
        %v370 = vmul.f32 %v329, %v348
        %s371 = sld [smem:[#allocation7 + $0x3]]
        %v372 = vstv %s371
        %v373 = vmul.f32 %v370, %v372
        %s374 = sld [smem:[#allocation8 + $0x3]]
        %v375 = vstv %s374
        %v376 = vadd.f32 %v373, %v375
        %s377 = sld [smem:[#allocation9]]
        %v378 = vstv %s377
        %v379 = vmul.f32 %v355, %v378
        %s380 = sld [smem:[#allocation9 + $0x1]]
        %v381 = vstv %s380
        %v382 = vmul.f32 %v362, %v381
        %v383 = vadd.f32 %v379, %v382
        %s384 = sld [smem:[#allocation9 + $0x2]]
        %v385 = vstv %s384
        %v386 = vmul.f32 %v369, %v385
        %v387 = vadd.f32 %v383, %v386
        %s388 = sld [smem:[#allocation9 + $0x3]]
        %v389 = vstv %s388
        %v390 = vmul.f32 %v376, %v389
        %v391 = vadd.f32 %v387, %v390
        %s392 = sld [smem:[#allocation11]]
        %v393 = vstv %s392
        %v394 = vadd.f32 %v391, %v393
        %395 = vst [vmem:[%s314] sm:$0x3] %v394
        %s396 = sld [smem:[#allocation9 + $0x80]]
        %v397 = vstv %s396
        %v398 = vmul.f32 %v355, %v397
        %s399 = sld [smem:[#allocation9 + $0x81]]
        %v400 = vstv %s399
        %v401 = vmul.f32 %v362, %v400
        %v402 = vadd.f32 %v398, %v401
        %s403 = sld [smem:[#allocation9 + $0x82]]
        %v404 = vstv %s403
        %v405 = vmul.f32 %v369, %v404
        %v406 = vadd.f32 %v402, %v405
        %s407 = sld [smem:[#allocation9 + $0x83]]
        %v408 = vstv %s407
        %v409 = vmul.f32 %v376, %v408
        %v410 = vadd.f32 %v406, %v409
        %s411 = sld [smem:[#allocation11 + $0x1]]
        %v412 = vstv %s411
        %v413 = vadd.f32 %v410, %v412
        %s414 = scalar_lea.vmem %s314, 2 [#allocation13]
        %415 = vst [vmem:[%s414] sm:$0x3] %v413
        %s416 = sld [smem:[#allocation9 + $0x100]]
        %v417 = vstv %s416
        %v418 = vmul.f32 %v355, %v417
        %s419 = sld [smem:[#allocation9 + $0x101]]
        %v420 = vstv %s419
        %v421 = vmul.f32 %v362, %v420
        %v422 = vadd.f32 %v418, %v421
        %s423 = sld [smem:[#allocation9 + $0x102]]
        %v424 = vstv %s423
        %v425 = vmul.f32 %v369, %v424
        %v426 = vadd.f32 %v422, %v425
        %s427 = sld [smem:[#allocation9 + $0x103]]
        %v428 = vstv %s427
        %v429 = vmul.f32 %v376, %v428
        %v430 = vadd.f32 %v426, %v429
        %s431 = sld [smem:[#allocation11 + $0x2]]
        %v432 = vstv %s431
        %v433 = vadd.f32 %v430, %v432
        %s434 = scalar_lea.vmem %s314, 4 [#allocation13]
        %435 = vst [vmem:[%s434] sm:$0x3] %v433
        %s436 = sld [smem:[#allocation9 + $0x180]]
        %v437 = vstv %s436
        %v438 = vmul.f32 %v355, %v437
        %s439 = sld [smem:[#allocation9 + $0x181]]
        %v440 = vstv %s439
        %v441 = vmul.f32 %v362, %v440
        %v442 = vadd.f32 %v438, %v441
        %s443 = sld [smem:[#allocation9 + $0x182]]
        %v444 = vstv %s443
        %v445 = vmul.f32 %v369, %v444
        %v446 = vadd.f32 %v442, %v445
        %s447 = sld [smem:[#allocation9 + $0x183]]
        %v448 = vstv %s447
        %v449 = vmul.f32 %v376, %v448
        %v450 = vadd.f32 %v446, %v449
        %s451 = sld [smem:[#allocation11 + $0x3]]
        %v452 = vstv %s451
        %v453 = vadd.f32 %v450, %v452
        %s454 = scalar_lea.vmem %s314, 6 [#allocation13]
        %455 = vst [vmem:[%s454] sm:$0x3] %v453
        %s456 = sand.u32 %s160, 1
        %s457 = scalar_lea.sflag [#allocation4], %s456
        %s458 = sand.u32 %s160, 1
        %s459 = smul.addr %s458, 8
        %s460 = scalar_lea.vmem [#allocation13], %s459
        // Predicated region
        $region61: #{tpu_custom_call.1} parent=39 // pred_check
          %p461 = pneg %p170
        $region62: #{tpu_custom_call.1} parent=39 // pred_check_branch
          %463 = sbr.rel (%p461) target = $region64
        $region63: #{tpu_custom_call.1} parent=39 // pred_region
          %465 = vsyncadd %s457, 0
          %s466 = smul.addr %s30, 4
          %s467 = sadd.s32 %s31, %s466
          %s468 = smul.addr %s467, 2
          %s469 = scalar_lea.hbm %s5, %s468
          %s470 = sshll.u32 %s460, 4
          %s471 = int_to_ptr.vmem [resolvable:$true] %s470
          %s472 = sshll.u32 %s469, 4
          %s473 = int_to_ptr.hbm [resolvable:$true] %s472
          %478 = dma.vmem_to_hbm [thread:$0]  %s471, 128, %s473, %s457, 32, 32, 2
        $region64: #{tpu_custom_call.1} parent=39 // pred_fallthru
          _
      $region40: #{tpu_custom_call.1} parent=5 // pred_fallthru
        _
      %p479 = scmp.le.s32.totalorder 2, %s21
      // Predicated region
      $region65: #{tpu_custom_call.1} parent=5 // pred_check
        %p480 = pneg %p479
      $region66: #{tpu_custom_call.1} parent=5 // pred_check_branch
        %482 = sbr.rel (%p480) target = $region68
      $region67: #{tpu_custom_call.1} parent=5 // pred_region
        %s483 = ssub.s32 %s21, 2
        // Predicated region
        $region69: #{tpu_custom_call.1} parent=67 // pred_check
          %p484 = pneg %p176
        $region70: #{tpu_custom_call.1} parent=67 // pred_check_branch
          %486 = sbr.rel (%p484) target = $region72
        $region71: #{tpu_custom_call.1} parent=67 // pred_region
          %s487 = sand.u32 %s161, 1
          %s488 = scalar_lea.sflag [#allocation4], %s487
          %s489 = sand.u32 %s161, 1
          %s490 = smul.addr %s489, 8
          %s491 = scalar_lea.vmem [#allocation13], %s490
          %493 = dma.done %s488, 128
        $region72: #{tpu_custom_call.1} parent=67 // pred_fallthru
          _
      $region68: #{tpu_custom_call.1} parent=5 // pred_fallthru
        _
    $region6: #{tpu_custom_call.1} parent=1 // loop_footer
      %s25 = sadd.s32 1, %s21
    $region7: #{tpu_custom_call.1} parent=1 // loop_footer_branch
      %20 = sbr.rel target = $region3
    $region8: #{tpu_custom_call.1} parent=1 // loop_exit
      _
    %494 = vsyncpa [#allocation3], 1
    %s495 = scalar_lea.sflag [#allocation3], 1
    %496 = vsyncpa %s495, 1
    %497 = vsyncpa [#allocation4], 1
    %s498 = scalar_lea.sflag [#allocation4], 1
    %499 = vsyncpa %s498, 1
    %500 = vsyncpa [#allocation5], 1
    %s501 = scalar_lea.sflag [#allocation5], 1
    %502 = vsyncpa %s501, 1
    %503 = vsyncpa [#allocation10], 1
    %504 = vsyncpa [#allocation6], 1
    %s505 = scalar_lea.sflag [#allocation6], 1
    %506 = vsyncpa %s505, 1
    %507 = vsyncpa [#allocation12], 1

</llo_original>
